<compile_context>
chip_gen: v7x
topology: tpu7x:2x2x1
jax: 0.10.0
libtpu: 0.0.40
codegen_flags: <defaults>
</compile_context>

<pallas_src>
import functools
import math

import jax
import jax.numpy as jnp
from jax.experimental import pallas as pl
from jax.experimental.pallas import tpu as pltpu


def _tpu_generation_info():
    """Returns (physical_vmem_bytes_per_core, num_parallel_slices)."""
    kind = ""
    try:
        kind = jax.devices()[0].device_kind.lower()
    except Exception:
        pass
    is_v7 = "v7" in kind
    try:
        vmem_phys = int(pltpu.get_tpu_info().vmem_capacity_bytes)
    except Exception:
        vmem_phys = (64 if is_v7 else 128) * 1024 * 1024
    if is_v7:
        # v7x has 64 MiB per TensorCore regardless of how the query reports it.
        vmem_phys = min(vmem_phys, 64 * 1024 * 1024)
    num_slices = 2 if is_v7 else 1   # only v7x has 2 TensorCores per chip
    return vmem_phys, num_slices


def _label_smoothing_kernel(x_ref, tgt_ref, out_ref, acc_ref, *,
                            padding_idx, smooth_val, confidence, c_const):
    i = pl.program_id(1)

    @pl.when(i == 0)
    def _():
        acc_ref[...] = jnp.zeros_like(acc_ref)

    x = x_ref[...].astype(jnp.float32)               # (tile_n, V) log-probs
    tgt = tgt_ref[...]                               # (tile_n, 1) i32 targets

    # Single fused weighted reduction over the vocab axis:
    #   weight = confidence at the target column, smooth_val elsewhere.
    col = jax.lax.broadcasted_iota(jnp.int32, x.shape, 1)
    w = jnp.where(col == tgt, jnp.float32(confidence), jnp.float32(smooth_val))
    weighted = jnp.sum(x * w, axis=-1, keepdims=True)                    # (tile_n, 1)
    x_pad = x[:, padding_idx:padding_idx + 1]                            # (tile_n, 1)

    loss_rows = (jnp.float32(c_const)
                 - weighted
                 + jnp.float32(smooth_val) * x_pad)
    # Rows whose target is the padding index (incl. N-padding rows) contribute 0.
    loss_rows = jnp.where(tgt == padding_idx, jnp.float32(0.0), loss_rows)

    acc_ref[...] += loss_rows

    @pl.when(i == pl.num_programs(1) - 1)
    def _():
        total = jnp.sum(acc_ref[...])
        r = jax.lax.broadcasted_iota(jnp.int32, out_ref.shape, 0)
        c = jax.lax.broadcasted_iota(jnp.int32, out_ref.shape, 1)
        out_ref[...] = jnp.where((r == 0) & (c == 0), total, jnp.float32(0.0))


def label_smoothing_loss(x, target, *, size, padding_idx, smoothing,
                         tile_n=None, num_slices=None):
    """x: (N, size) float log-probs; target: (N,) int class indices. Returns f32 loss."""
    N, V = x.shape
    assert V == size

    confidence = 1.0 - smoothing
    smooth_val = smoothing / (size - 2)

    def _xlogx(v):
        return float(v) * math.log(v) if v > 0.0 else 0.0

    # sum_j t_j * log(t_j) for a non-padding row (t has only two distinct values).
    c_const = _xlogx(confidence) + (size - 2) * _xlogx(smooth_val)

    vmem_phys, auto_slices = _tpu_generation_info()
    if num_slices is None:
        num_slices = auto_slices
    # Leave headroom below physical VMEM; blocks are double-buffered by Pallas.
    vmem_limit = int(min(vmem_phys * 3 // 4, 96 * 1024 * 1024))

    itemsize = jnp.dtype(x.dtype).itemsize
    row_mult = 16 if itemsize == 2 else 8            # sublane packing for 16-bit dtypes

    if tile_n is None:
        # Large blocks amortize the ~0.35 us/step overhead: aim for
        # vmem_limit/3 per x block (<= 32 MiB), capped by the per-slice rows.
        target_bytes = min(32 * 1024 * 1024, max(8 * 1024 * 1024, vmem_limit // 3))
        bytes_per_row = itemsize * V
        tile_n = max(row_mult,
                     (target_bytes // bytes_per_row) // row_mult * row_mult)
        rows_per_slice = -(-N // num_slices)
        rows_per_slice = -(-rows_per_slice // row_mult) * row_mult
        tile_n = min(tile_n, max(row_mult, rows_per_slice))
    else:
        tile_n = max(row_mult, -(-tile_n // row_mult) * row_mult)

    steps = -(-N // (num_slices * tile_n))           # grid steps per parallel slice
    n_pad = num_slices * steps * tile_n

    if n_pad != N:
        x = jnp.pad(x, ((0, n_pad - N), (0, 0)))
        target = jnp.pad(target, (0, n_pad - N), constant_values=padding_idx)
    tgt2d = target.astype(jnp.int32).reshape(n_pad, 1)

    kernel = functools.partial(
        _label_smoothing_kernel,
        padding_idx=padding_idx, smooth_val=smooth_val,
        confidence=confidence, c_const=c_const)

    out = pl.pallas_call(
        kernel,
        out_shape=jax.ShapeDtypeStruct((8, 128 * num_slices), jnp.float32),
        grid_spec=pltpu.PrefetchScalarGridSpec(
            num_scalar_prefetch=0,
            grid=(num_slices, steps),
            in_specs=[
                pl.BlockSpec((tile_n, V), lambda c, i: (c * steps + i, 0)),
                pl.BlockSpec((tile_n, 1), lambda c, i: (c * steps + i, 0)),
            ],
            out_specs=pl.BlockSpec((8, 128), lambda c, i: (0, c)),
            scratch_shapes=[pltpu.VMEM((tile_n, 1), jnp.float32)],
        ),
        compiler_params=pltpu.CompilerParams(
            dimension_semantics=("parallel", "arbitrary"),
            vmem_limit_bytes=vmem_limit),
    )(x, tgt2d)
    # Each parallel slice left its partial sum at (0, 0) of its own 128-lane
    # output block (rest zeros), so a plain sum combines the partials.
    return jnp.sum(out)


def _reference_loss(x, target, *, size, padding_idx, smoothing):
    """Pure-JAX replica of the PyTorch LabelSmoothing forward."""
    n = x.shape[0]
    conf = 1.0 - smoothing
    smooth_val = smoothing / (size - 2)
    td = jnp.full_like(x, smooth_val)
    td = td.at[jnp.arange(n), target].set(conf)
    td = td.at[:, padding_idx].set(0.0)
    td = jnp.where((target == padding_idx)[:, None], 0.0, td)
    term = jnp.where(td > 0, td * (jnp.log(jnp.where(td > 0, td, 1.0)) - x), 0.0)
    return jnp.sum(term)


if __name__ == "__main__":
    key = jax.random.PRNGKey(0)

    # --- Test 1: the module's nominal small config -------------------------
    SIZE, PADDING_IDX, SMOOTHING, N = 32, 0, 0.4, 8
    k_logits, k_tgt, key = jax.random.split(key, 3)
    logits = jax.random.normal(k_logits, (N, SIZE), dtype=jnp.float32)
    x = jax.nn.log_softmax(logits, axis=-1)              # KLDivLoss expects log-probs
    target = jax.random.randint(k_tgt, (N,), 0, SIZE, dtype=jnp.int32)
    target = target.at[3].set(PADDING_IDX)               # include a padded row

    loss = label_smoothing_loss(
        x, target, size=SIZE, padding_idx=PADDING_IDX, smoothing=SMOOTHING)
    jax.block_until_ready(loss)
    ref_loss = _reference_loss(
        x, target, size=SIZE, padding_idx=PADDING_IDX, smoothing=SMOOTHING)
    assert jnp.allclose(loss, ref_loss, rtol=1e-4, atol=1e-4), (loss, ref_loss)

    # --- Test 2: padding/ragged path: N not a multiple of slices*tile_n,
    #             non-128-multiple vocab, nonzero padding_idx, multi-step grid.
    SIZE2, PAD2, SM2, N2 = 300, 2, 0.1, 37
    k_logits2, k_tgt2, key = jax.random.split(key, 3)
    logits2 = jax.random.normal(k_logits2, (N2, SIZE2), dtype=jnp.float32)
    x2 = jax.nn.log_softmax(logits2, axis=-1)
    target2 = jax.random.randint(k_tgt2, (N2,), 0, SIZE2, dtype=jnp.int32)
    target2 = target2.at[5].set(PAD2)

    loss2 = label_smoothing_loss(
        x2, target2, size=SIZE2, padding_idx=PAD2, smoothing=SM2,
        tile_n=8, num_slices=2)                          # force multi-slice, multi-step
    jax.block_until_ready(loss2)
    ref_loss2 = _reference_loss(
        x2, target2, size=SIZE2, padding_idx=PAD2, smoothing=SM2)
    assert jnp.allclose(loss2, ref_loss2, rtol=1e-4, atol=1e-4), (loss2, ref_loss2)

    print("KERNEL_OK")
</pallas_src>

<mosaic_0001>
module attributes {stable_mosaic.version = 11 : i64} {
  func.func @_label_smoothing_kernel(%arg0: i32, %arg1: i32, %arg2: memref<8x32xf32, #tpu.memory_space<vmem>>, %arg3: memref<8x1xi32, #tpu.memory_space<vmem>>, %arg4: memref<8x128xf32, #tpu.memory_space<vmem>>, %arg5: memref<8x1xf32, #tpu.memory_space<vmem>>) attributes {dimension_semantics = [#tpu.dimension_semantics<parallel>, #tpu.dimension_semantics<arbitrary>], iteration_bounds = array<i64: 1, 1>, scalar_prefetch = 0 : i64, scratch_operands = 1 : i64, tpu.core_type = #tpu.core_type<tc>, window_params = [{transform_indices = @transform_0, window_bounds = array<i64: 8, 32>}, {transform_indices = @transform_1, window_bounds = array<i64: 8, 1>}, {transform_indices = @transform_2, window_bounds = array<i64: 8, 128>}]} {
    %c0_i32 = arith.constant 0 : i32
    %0 = arith.cmpi eq, %arg1, %c0_i32 : i32
    %1 = arith.extui %0 : i1 to i32
    %c0_i32_0 = arith.constant 0 : i32
    %2 = arith.cmpi ne, %1, %c0_i32_0 : i32
    scf.if %2 {
      %cst_16 = arith.constant 0.000000e+00 : f32
      %30 = vector.broadcast %cst_16 : f32 to vector<8x1xf32>
      %c0_17 = arith.constant 0 : index
      %c0_18 = arith.constant 0 : index
      %31 = vector.load %arg5[%c0_17, %c0_18] : memref<8x1xf32, #tpu.memory_space<vmem>>, vector<8x1xf32>
      tpu.vector_store %arg5[%c0_17, %c0_18], %30 {strides = array<i32>} : memref<8x1xf32, #tpu.memory_space<vmem>>, vector<8x1xf32>,
    } else {
    }
    %c0 = arith.constant 0 : index
    %c0_1 = arith.constant 0 : index
    %3 = vector.load %arg2[%c0, %c0_1] : memref<8x32xf32, #tpu.memory_space<vmem>>, vector<8x32xf32>
    %c0_2 = arith.constant 0 : index
    %c0_3 = arith.constant 0 : index
    %4 = vector.load %arg3[%c0_2, %c0_3] : memref<8x1xi32, #tpu.memory_space<vmem>>, vector<8x1xi32>
    %5 = tpu.iota {dimensions = array<i32: 1>} : vector<8x32xi32>
    %6 = vector.broadcast %4 : vector<8x1xi32> to vector<8x32xi32>
    %7 = arith.cmpi eq, %5, %6 : vector<8x32xi32>
    %cst = arith.constant 6.000000e-01 : f32
    %cst_4 = arith.constant 0.0133333337 : f32
    %8 = vector.broadcast %cst : f32 to vector<8x32xf32>
    %9 = vector.broadcast %cst_4 : f32 to vector<8x32xf32>
    %10 = arith.select %7, %8, %9 : vector<8x32xi1>, vector<8x32xf32>
    %11 = arith.mulf %3, %10 : vector<8x32xf32>
    %cst_5 = arith.constant dense<0.000000e+00> : vector<8xf32>
    %12 = vector.multi_reduction <add>, %11, %cst_5 [1] : vector<8x32xf32> to vector<8xf32>
    %13 = vector.shape_cast %12 : vector<8xf32> to vector<8x1xf32>
    %14 = vector.extract_strided_slice %3 {offsets = [0, 0], sizes = [8, 1], strides = [1, 1]} : vector<8x32xf32> to vector<8x1xf32>
    %cst_6 = arith.constant -2.03349066 : f32
    %15 = vector.broadcast %cst_6 : f32 to vector<8x1xf32>
    %16 = arith.subf %15, %13 : vector<8x1xf32>
    %cst_7 = arith.constant 0.0133333337 : f32
    %17 = vector.broadcast %cst_7 : f32 to vector<8x1xf32>
    %18 = arith.mulf %17, %14 : vector<8x1xf32>
    %19 = arith.addf %16, %18 : vector<8x1xf32>
    %c0_i32_8 = arith.constant 0 : i32
    %20 = vector.broadcast %c0_i32_8 : i32 to vector<8x1xi32>
    %21 = arith.cmpi eq, %4, %20 : vector<8x1xi32>
    %cst_9 = arith.constant 0.000000e+00 : f32
    %22 = vector.broadcast %cst_9 : f32 to vector<8x1xf32>
    %23 = arith.select %21, %22, %19 : vector<8x1xi1>, vector<8x1xf32>
    %c0_10 = arith.constant 0 : index
    %c0_11 = arith.constant 0 : index
    %24 = vector.load %arg5[%c0_10, %c0_11] : memref<8x1xf32, #tpu.memory_space<vmem>>, vector<8x1xf32>
    %25 = arith.addf %24, %23 : vector<8x1xf32>
    %c0_12 = arith.constant 0 : index
    %c0_13 = arith.constant 0 : index
    %26 = vector.load %arg5[%c0_12, %c0_13] : memref<8x1xf32, #tpu.memory_space<vmem>>, vector<8x1xf32>
    tpu.vector_store %arg5[%c0_12, %c0_13], %25 {strides = array<i32>} : memref<8x1xf32, #tpu.memory_space<vmem>>, vector<8x1xf32>,
    %c0_i32_14 = arith.constant 0 : i32
    %27 = arith.cmpi eq, %arg1, %c0_i32_14 : i32
    %28 = arith.extui %27 : i1 to i32
    %c0_i32_15 = arith.constant 0 : i32
    %29 = arith.cmpi ne, %28, %c0_i32_15 : i32
    scf.if %29 {
      %c0_16 = arith.constant 0 : index
      %c0_17 = arith.constant 0 : index
      %30 = vector.load %arg5[%c0_16, %c0_17] : memref<8x1xf32, #tpu.memory_space<vmem>>, vector<8x1xf32>
      %31 = vector.shape_cast %30 : vector<8x1xf32> to vector<1x8x1xf32>
      %cst_18 = arith.constant dense<0.000000e+00> : vector<1xf32>
      %32 = vector.multi_reduction <add>, %31, %cst_18 [1, 2] : vector<1x8x1xf32> to vector<1xf32>
      %33 = vector.shape_cast %32 : vector<1xf32> to vector<1x1x1xf32>
      %34 = vector.extract %33[0, 0, 0] : f32 from vector<1x1x1xf32>
      %35 = tpu.iota {dimensions = array<i32: 0>} : vector<8x128xi32>
      %36 = tpu.iota {dimensions = array<i32: 1>} : vector<8x128xi32>
      %c0_i32_19 = arith.constant 0 : i32
      %37 = vector.broadcast %c0_i32_19 : i32 to vector<8x128xi32>
      %38 = arith.cmpi eq, %35, %37 : vector<8x128xi32>
      %c0_i32_20 = arith.constant 0 : i32
      %39 = vector.broadcast %c0_i32_20 : i32 to vector<8x128xi32>
      %40 = arith.cmpi eq, %36, %39 : vector<8x128xi32>
      %41 = arith.andi %38, %40 : vector<8x128xi1>
      %cst_21 = arith.constant 0.000000e+00 : f32
      %42 = vector.broadcast %34 : f32 to vector<8x128xf32>
      %43 = vector.broadcast %cst_21 : f32 to vector<8x128xf32>
      %44 = arith.select %41, %42, %43 : vector<8x128xi1>, vector<8x128xf32>
      %c0_22 = arith.constant 0 : index
      %c0_23 = arith.constant 0 : index
      %45 = vector.load %arg4[%c0_22, %c0_23] : memref<8x128xf32, #tpu.memory_space<vmem>>, vector<8x128xf32>
      tpu.vector_store %arg4[%c0_22, %c0_23], %44 {strides = array<i32>} : memref<8x128xf32, #tpu.memory_space<vmem>>, vector<8x128xf32>,
    } else {
    }
    return
  }
  func.func @transform_0(%arg0: i32, %arg1: i32) -> (i32, i32) {
    %c1_i32 = arith.constant 1 : i32
    %0 = arith.muli %arg0, %c1_i32 : i32
    %1 = arith.addi %0, %arg1 : i32
    %c0_i32 = arith.constant 0 : i32
    %c0_i32_0 = arith.constant 0 : i32
    return %1, %c0_i32 : i32, i32
  }
  func.func @transform_1(%arg0: i32, %arg1: i32) -> (i32, i32) {
    %c1_i32 = arith.constant 1 : i32
    %0 = arith.muli %arg0, %c1_i32 : i32
    %1 = arith.addi %0, %arg1 : i32
    %c0_i32 = arith.constant 0 : i32
    %c0_i32_0 = arith.constant 0 : i32
    return %1, %c0_i32 : i32, i32
  }
  func.func @transform_2(%arg0: i32, %arg1: i32) -> (i32, i32) {
    %c0_i32 = arith.constant 0 : i32
    %c0_i32_0 = arith.constant 0 : i32
    return %c0_i32, %arg0 : i32, i32
  }
}

</mosaic_0001>

<llo_original>
// kernel: tpu_custom_call.1
$region0: #{tpu_custom_call.1}
  #allocation0 [shape = 'u32[]', space=smem, size = 0x4, offset = 0x4, fixed_abs, tag = 'smem constant byte address 0x4 - core index']
  #allocation1 [shape = 'u32[144,128]{1,0:T(1,128)}', space=vmem, size = 0x12000, scoped, tag = 'internal scratch']
  #allocation2 [shape = 'f32[8,1]{1,0:T(8,128)}', space=vmem, size = 0x1000, scoped, tag = 'scratch operand']
  %s0 = inlined_call_operand.hbm [shape: f32[8,32], index: 0, kind: input, shape index: {}]
  %s1 = inlined_call_operand.hbm [shape: s32[8,1], index: 1, kind: input, shape index: {}]
  %s2 = inlined_call_operand.hbm [shape: f32[8,128], index: 2, kind: output, shape index: {}]
  %s3 = sld [smem:[#allocation0]]
  $region34: #{tpu_custom_call.1} parent=0
    _
  %s5 = ssub.s32 1, %s3
  %s6 = scalar_select 0, %s5, %s3
  $region1: #{tpu_custom_call.1} parent=0
    #allocation3 [shape = 'u8[4096]{0}', space=vmem, size = 0x1000, scoped, tag = 'input window, operand 0, single buffered']
    #allocation4 [shape = 's32[1]{0}', space=sflag, size = 0x4, scoped, tag = 'scoped memory for tpu_custom_call.1']
    #allocation5 [shape = 's32[1]{0}', space=sflag, size = 0x4, scoped, tag = 'scoped memory for tpu_custom_call.1']
    #allocation6 [shape = 'u8[4096]{0}', space=vmem, size = 0x1000, scoped, tag = 'input window, operand 1, single buffered']
    #allocation7 [shape = 's32[1]{0}', space=sflag, size = 0x4, scoped, tag = 'scoped memory for tpu_custom_call.1']
    #allocation8 [shape = 'u8[4096]{0}', space=vmem, size = 0x1000, scoped, tag = 'output window, operand 0, single buffered']
    %7 = vsyncpa [#allocation4], 0
    %8 = vsyncpa [#allocation7], 0
    %9 = vsyncpa [#allocation5], 0
    // Predicated region
    $region2: #{tpu_custom_call.1} parent=1 // pred_check
      _
    $region3: #{tpu_custom_call.1} parent=1 // pred_check_branch
      %11 = sbr.rel (0) target = $region5
    $region4: #{tpu_custom_call.1} parent=1 // pred_region
      %s12 = sadd.s32 0, 0
      %s14 = ssub.s32 128, 128
      %15 = vsyncadd [#allocation4], %s14
      %s16 = smul.addr %s12, 128
      %s17 = scalar_lea.hbm %s0, %s16
      %s19 = sshll.u32 [#allocation3], 4
      %s20 = int_to_ptr.vmem [resolvable:$true] %s19
      %22 = dma.hbm_to_vmem [thread:$0]  %s17, 128, %s20, [#allocation4]
    $region5: #{tpu_custom_call.1} parent=1 // pred_fallthru
      _
    // Predicated region
    $region6: #{tpu_custom_call.1} parent=1 // pred_check
      _
    $region7: #{tpu_custom_call.1} parent=1 // pred_check_branch
      %24 = sbr.rel (0) target = $region9
    $region8: #{tpu_custom_call.1} parent=1 // pred_region
      %s25 = sadd.s32 0, 0
      %s27 = ssub.s32 128, 128
      %28 = vsyncadd [#allocation7], %s27
      %s29 = smul.addr %s25, 128
      %s30 = scalar_lea.hbm %s1, %s29
      %s32 = sshll.u32 [#allocation6], 4
      %s33 = int_to_ptr.vmem [resolvable:$true] %s32
      %35 = dma.hbm_to_vmem [thread:$0]  %s30, 128, %s33, [#allocation7]
    $region9: #{tpu_custom_call.1} parent=1 // pred_fallthru
      _
    // Predicated region
    $region10: #{tpu_custom_call.1} parent=1 // pred_check
      _
    $region11: #{tpu_custom_call.1} parent=1 // pred_check_branch
      %37 = sbr.rel (0) target = $region13
    $region12: #{tpu_custom_call.1} parent=1 // pred_region
      %38 = dma.done [#allocation4], 128
    $region13: #{tpu_custom_call.1} parent=1 // pred_fallthru
      _
    // Predicated region
    $region14: #{tpu_custom_call.1} parent=1 // pred_check
      _
    $region15: #{tpu_custom_call.1} parent=1 // pred_check_branch
      %40 = sbr.rel (0) target = $region17
    $region16: #{tpu_custom_call.1} parent=1 // pred_region
      %41 = dma.done [#allocation7], 128
    $region17: #{tpu_custom_call.1} parent=1 // pred_fallthru
      _
    %s42 = sadd.s32 0, 0
    %s43 = sadd.s32 0, 0
    %p44 = scmp.eq.s32.totalorder 0, 0
    // Predicated region
    $region18: #{tpu_custom_call.1} parent=1 // pred_check
      %p45 = pneg %p44
    $region19: #{tpu_custom_call.1} parent=1 // pred_check_branch
      %47 = sbr.rel (%p45) target = $region21
    $region20: #{tpu_custom_call.1} parent=1 // pred_region
      %vm48 = vcmask 7168
      %49 = vst.msk [vmem:[#allocation2] sm:$0xff] %vm48, 0.0
    $region21: #{tpu_custom_call.1} parent=1 // pred_fallthru
      _
    %v50 = vld [vmem:[#allocation3] sm:$0xff]
    %v51 = vld [vmem:[#allocation6] sm:$0xff]
    %v52 = vlaneseq
    %v53 = vand.u32 %v52, 127
    %54 = vset.pattern.permute.xlu0 0
    %55 = vperm.xlu0 %54, %v51
    %v56 = vpop.permute.xlu0 %55
    %vm57 = vcmp.eq.s32.totalorder %v53, %v56
    %v58 = vsel %vm57, 0.6, 0.013333334
    %v59 = vmul.f32 %v50, %v58
    %vm60 = vcmask 261120
    %v61 = vsel %vm60, %v59, 0.0
    %62 = vadd.xlane.f32.xlu0 %v61
    %v63 = vpop.xlane.xlu0 %62
    %v64 = vsub.f32 -2.0334907, %v63
    %v65 = vmul.f32 %v50, 0.013333334
    %v66 = vadd.f32 %v64, %v65
    %vm67 = vcmp.eq.s32.totalorder %v51, 0
    %v68 = vsel %vm67, 0.0, %v66
    %v69 = vld [vmem:[#allocation2] sm:$0xff]
    %v70 = vadd.f32 %v69, %v68
    %vm71 = vcmask 7168
    %72 = vst.msk [vmem:[#allocation2] sm:$0xff] %vm71, %v70
    // Predicated region
    $region22: #{tpu_custom_call.1} parent=1 // pred_check
      %p73 = pneg %p44
    $region23: #{tpu_custom_call.1} parent=1 // pred_check_branch
      %75 = sbr.rel (%p73) target = $region25
    $region24: #{tpu_custom_call.1} parent=1 // pred_region
      %v76 = vld [vmem:[#allocation2] sm:$0xff]
      %v77 = vsel %vm71, %v76, 0.0
      %78 = vadd.xlane.f32.xlu0 %v77
      %v79 = vpop.xlane.xlu0 %78
      %v80 = vrot.slane %v79, 4
      %v81 = vadd.f32 %v79, %v80
      %v82 = vrot.slane %v81, 2
      %v83 = vadd.f32 %v81, %v82
      %v84 = vrot.slane %v83, 1
      %v85 = vadd.f32 %v83, %v84
      %s86 = vtos %v85
      %v87 = vlaneseq
      %v88 = vshrl.u32 %v87, 7
      %vm89 = vcmp.eq.s32.totalorder %v88, 0
      %vm90 = vcmp.eq.s32.totalorder %v53, 0
      %vm91 = vmand %vm89, %vm90
      %v92 = vstv %s86
      %v93 = vsel %vm91, %v92, 0.0
      %94 = vst [vmem:[#allocation8] sm:$0xff] %v93
    $region25: #{tpu_custom_call.1} parent=1 // pred_fallthru
      _
    // Predicated region
    $region26: #{tpu_custom_call.1} parent=1 // pred_check
      _
    $region27: #{tpu_custom_call.1} parent=1 // pred_check_branch
      %96 = sbr.rel (0) target = $region29
    $region28: #{tpu_custom_call.1} parent=1 // pred_region
      %s98 = ssub.s32 128, 128
      %99 = vsyncadd [#allocation5], %s98
      %s101 = sshll.u32 [#allocation8], 4
      %s102 = int_to_ptr.vmem [resolvable:$true] %s101
      %104 = dma.vmem_to_hbm [thread:$0]  %s102, 128, %s2, [#allocation5]
    $region29: #{tpu_custom_call.1} parent=1 // pred_fallthru
      _
    // Predicated region
    $region30: #{tpu_custom_call.1} parent=1 // pred_check
      _
    $region31: #{tpu_custom_call.1} parent=1 // pred_check_branch
      %106 = sbr.rel (0) target = $region33
    $region32: #{tpu_custom_call.1} parent=1 // pred_region
      %107 = dma.done [#allocation5], 128
    $region33: #{tpu_custom_call.1} parent=1 // pred_fallthru
      _
    %108 = vsyncpa [#allocation4], 1
    %109 = vsyncpa [#allocation7], 1
    %110 = vsyncpa [#allocation5], 1

</llo_original>
